<compile_context>
chip_gen: v7x
topology: tpu7x:2x2x1
jax: 0.10.0
libtpu: 0.0.40
codegen_flags: <defaults>
</compile_context>

<pallas_src>
import math
import numpy as np
import jax
import jax.numpy as jnp
from jax.experimental import pallas as pl
from jax.experimental.pallas import tpu as pltpu

_VMEM_LIMIT = 48 * 1024 * 1024  # below v7x's 64 MiB physical VMEM


# --------------------------------------------------------------------------
# small helpers
# --------------------------------------------------------------------------

def _round_up(n, m):
    return ((n + m - 1) // m) * m


def _pad_axis_jnp(x, axis, target, value=0.0):
    pad = target - x.shape[axis]
    if pad <= 0:
        return x
    widths = [(0, 0)] * x.ndim
    widths[axis] = (0, pad)
    return jnp.pad(x, widths, constant_values=value)


def _row_tile(n, row_tile):
    # biggest tile <= row_tile that still cleanly covers small inputs
    return min(row_tile, _round_up(max(n, 1), 8))


# --------------------------------------------------------------------------
# Pallas kernels (dense hot paths)
# --------------------------------------------------------------------------

def _layernorm_kernel(x_ref, g_ref, b_ref, o_ref):
    x = x_ref[...]
    mu = jnp.mean(x, axis=-1, keepdims=True)
    var = jnp.mean((x - mu) * (x - mu), axis=-1, keepdims=True)
    xn = (x - mu) * jax.lax.rsqrt(var + 1e-5)
    o_ref[...] = (xn * g_ref[...] + b_ref[...]).astype(o_ref.dtype)


def layernorm_pallas(x, gamma, beta, row_tile=2048):
    # emits bf16 directly (consumed only by the window gathers / MXU inputs)
    n, c = x.shape
    tile = _row_tile(n, row_tile)
    n_pad = _round_up(n, tile)
    xp = _pad_axis_jnp(x, 0, n_pad)
    out = pl.pallas_call(
        _layernorm_kernel,
        out_shape=jax.ShapeDtypeStruct((n_pad, c), jnp.bfloat16),
        grid=(n_pad // tile,),
        in_specs=[pl.BlockSpec((tile, c), lambda i: (i, 0)),
                  pl.BlockSpec((1, c), lambda i: (0, 0)),
                  pl.BlockSpec((1, c), lambda i: (0, 0))],
        out_specs=pl.BlockSpec((tile, c), lambda i: (i, 0)),
        compiler_params=pltpu.CompilerParams(
            dimension_semantics=("parallel",), vmem_limit_bytes=_VMEM_LIMIT),
    )(xp, gamma, beta)
    return out[:n]


def _ffn_kernel(a_ref, b_ref, v_ref, g_ref, be_ref,
                w1_ref, b1_ref, w2_ref, b2_ref, o_ref):
    # fused: scattered = where(valid, attn, shortcut); x = scattered + shortcut
    #        out = x + linear2(relu(linear1(LayerNorm(x))))
    bf, f32 = jnp.bfloat16, jnp.float32
    short = b_ref[...]
    att = a_ref[...].astype(f32)
    x = jnp.where(v_ref[...] > 0.5, att, short) + short
    mu = jnp.mean(x, axis=-1, keepdims=True)
    var = jnp.mean((x - mu) * (x - mu), axis=-1, keepdims=True)
    xn = (x - mu) * jax.lax.rsqrt(var + 1e-5) * g_ref[...] + be_ref[...]
    h = jnp.dot(xn.astype(bf), w1_ref[...],
                preferred_element_type=f32) + b1_ref[...]
    h = jnp.maximum(h, 0.0)
    y = jnp.dot(h.astype(bf), w2_ref[...],
                preferred_element_type=f32) + b2_ref[...]
    o_ref[...] = x + y


def ffn_pallas(attn_sel, x_shortcut, valid_f, params, row_tile=2048):
    n, c = x_shortcut.shape
    f = params['w1'].shape[1]
    tile = _row_tile(n, row_tile)
    n_pad = _round_up(n, tile)
    a = _pad_axis_jnp(attn_sel, 0, n_pad)
    b = _pad_axis_jnp(x_shortcut, 0, n_pad)
    v = _pad_axis_jnp(valid_f, 0, n_pad)
    w1 = params['w1'].astype(jnp.bfloat16)
    w2 = params['w2'].astype(jnp.bfloat16)
    out = pl.pallas_call(
        _ffn_kernel,
        out_shape=jax.ShapeDtypeStruct((n_pad, c), jnp.float32),
        grid=(n_pad // tile,),
        in_specs=[pl.BlockSpec((tile, c), lambda i: (i, 0)),
                  pl.BlockSpec((tile, c), lambda i: (i, 0)),
                  pl.BlockSpec((tile, 1), lambda i: (i, 0)),
                  pl.BlockSpec((1, c), lambda i: (0, 0)),
                  pl.BlockSpec((1, c), lambda i: (0, 0)),
                  pl.BlockSpec((c, f), lambda i: (0, 0)),
                  pl.BlockSpec((1, f), lambda i: (0, 0)),
                  pl.BlockSpec((f, c), lambda i: (0, 0)),
                  pl.BlockSpec((1, c), lambda i: (0, 0))],
        out_specs=pl.BlockSpec((tile, c), lambda i: (i, 0)),
        compiler_params=pltpu.CompilerParams(
            dimension_semantics=("parallel",), vmem_limit_bytes=_VMEM_LIMIT),
    )(a, b, v, params['ln2_g'], params['ln2_b'],
      w1, params['b1'], w2, params['b2'])
    return out[:n]


def _make_mha_kernel(num_heads, wb, sq, sk, c):
    # TODO(synk): MixedScaleAttention source is unavailable; implemented as a
    # standard masked multi-head attention (keys also serve as values), with
    # masked queries zeroed in the output.  pos_proj is fused in.
    assert c % num_heads == 0
    dh = c // num_heads
    s2 = sq + sk
    scale = 1.0 / math.sqrt(dh)
    bf, f32 = jnp.bfloat16, jnp.float32
    H = num_heads

    def kernel(qf_ref, kf_ref, side_ref, negk_ref,
               wp1_ref, bp1_ref, wp2_ref, bp2_ref,
               wq_ref, bq_ref, wkv_ref, bkv_ref, wo_ref, bo_ref, o_ref):
        side = side_ref[...]                                   # [wb, s2, 8] f32
        # positional embedding for q AND k rows in ONE pass; lanes 6/7 of the
        # packed tensor multiply zero rows of wp1, so only the 6 pos channels
        # contribute (Conv1d k=1 == per-row Linear).
        pin = side.reshape(wb * s2, 8).astype(bf)
        h1 = jnp.dot(pin, wp1_ref[...], preferred_element_type=f32) + bp1_ref[...]
        h1 = jnp.maximum(h1, 0.0)
        pe = jnp.dot(h1.astype(bf), wp2_ref[...],
                     preferred_element_type=f32) + bp2_ref[...]
        pe = jnp.maximum(pe, 0.0).reshape(wb, s2, c)

        q2 = qf_ref[...].astype(f32) + pe[:, :sq, :]           # [wb, sq, c]
        k2 = kf_ref[...].astype(f32) + pe[:, sq:, :]           # [wb, sk, c]

        # fused q / (k,v) projections over all wb windows at once
        qp = jnp.dot(q2.reshape(wb * sq, c).astype(bf), wq_ref[...],
                     preferred_element_type=f32) + bq_ref[...]
        kvp = jnp.dot(k2.reshape(wb * sk, c).astype(bf), wkv_ref[...],
                      preferred_element_type=f32) + bkv_ref[...]

        qp3 = qp.astype(bf).reshape(wb, sq, c)
        kp3 = kvp[:, :c].astype(bf).reshape(wb, sk, c)
        vp3 = kvp[:, c:].astype(bf).reshape(wb, sk, c)

        # heads stacked on the leading batch axis -> single batched score
        # matmul, single softmax, single batched AV matmul.
        q_all = jnp.concatenate(
            [qp3[:, :, i * dh:(i + 1) * dh] for i in range(H)], axis=0)
        k_all = jnp.concatenate(
            [kp3[:, :, i * dh:(i + 1) * dh] for i in range(H)], axis=0)
        v_all = jnp.concatenate(
            [vp3[:, :, i * dh:(i + 1) * dh] for i in range(H)], axis=0)

        s = jax.lax.dot_general(q_all, k_all, (((2,), (2,)), ((0,), (0,))),
                                preferred_element_type=f32) * scale   # [H*wb,sq,sk]
        neg = negk_ref[...]                                            # [wb,1,sk]
        s = s + jnp.concatenate([neg] * H, axis=0)
        s = s - jnp.max(s, axis=-1, keepdims=True)
        p = jnp.exp(s)
        p = p * pl.reciprocal(jnp.sum(p, axis=-1, keepdims=True), approx=True)

        av = jax.lax.dot_general(p.astype(bf), v_all, (((2,), (1,)), ((0,), (0,))),
                                 preferred_element_type=f32)           # [H*wb,sq,dh]
        # merge heads back onto lanes -> ONE (wb*sq, c) x (c, c) output matmul
        av_cat = jnp.concatenate(
            [av[i * wb:(i + 1) * wb] for i in range(H)], axis=-1)      # [wb,sq,c]
        out = jnp.dot(av_cat.reshape(wb * sq, c).astype(bf), wo_ref[...],
                      preferred_element_type=f32) + bo_ref[...]

        keep = side[:, :sq, 6:7]                                       # [wb,sq,1]
        o_ref[...] = (out.reshape(wb, sq, c) * keep).astype(o_ref.dtype)
    return kernel


def mha_pos_attn_pallas(q_fea, k_fea, side, negk, params, num_heads, win_block=64):
    wn, sq, c = q_fea.shape
    sk = k_fea.shape[1]
    s2 = side.shape[1]
    # win_block is sweepable (64/128/256); keep grids >=2 steps on v7x when
    # the window count allows.
    wb = min(_round_up(win_block, 8), _round_up(wn, 8))
    wn_pad = _round_up(wn, wb)

    q_fea = _pad_axis_jnp(q_fea, 0, wn_pad)
    k_fea = _pad_axis_jnp(k_fea, 0, wn_pad)
    side = _pad_axis_jnp(side, 0, wn_pad)
    negk = _pad_axis_jnp(negk, 0, wn_pad)

    bf = jnp.bfloat16
    wq = params['wq'].astype(bf)
    wkv = jnp.concatenate([params['wk'], params['wv']], axis=1).astype(bf)
    bkv = jnp.concatenate([params['bk'], params['bv']], axis=1)
    wp1 = jnp.zeros((8, c), jnp.float32).at[:6].set(params['wp1']).astype(bf)
    wp2 = params['wp2'].astype(bf)
    wo = params['wo'].astype(bf)

    out = pl.pallas_call(
        _make_mha_kernel(num_heads, wb, sq, sk, c),
        out_shape=jax.ShapeDtypeStruct((wn_pad, sq, c), jnp.bfloat16),
        grid=(wn_pad // wb,),
        in_specs=[pl.BlockSpec((wb, sq, c), lambda w: (w, 0, 0)),    # q feats bf16
                  pl.BlockSpec((wb, sk, c), lambda w: (w, 0, 0)),    # k feats bf16
                  pl.BlockSpec((wb, s2, 8), lambda w: (w, 0, 0)),    # packed pos/keep
                  pl.BlockSpec((wb, 1, sk), lambda w: (w, 0, 0)),    # -1e9 * k_mask
                  pl.BlockSpec((8, c), lambda w: (0, 0)),            # wp1
                  pl.BlockSpec((1, c), lambda w: (0, 0)),            # bp1
                  pl.BlockSpec((c, c), lambda w: (0, 0)),            # wp2
                  pl.BlockSpec((1, c), lambda w: (0, 0)),            # bp2
                  pl.BlockSpec((c, c), lambda w: (0, 0)),            # wq
                  pl.BlockSpec((1, c), lambda w: (0, 0)),            # bq
                  pl.BlockSpec((c, 2 * c), lambda w: (0, 0)),        # wkv
                  pl.BlockSpec((1, 2 * c), lambda w: (0, 0)),        # bkv
                  pl.BlockSpec((c, c), lambda w: (0, 0)),            # wo (bf16)
                  pl.BlockSpec((1, c), lambda w: (0, 0))],           # bo
        out_specs=pl.BlockSpec((wb, sq, c), lambda w: (w, 0, 0)),
        compiler_params=pltpu.CompilerParams(
            dimension_semantics=("parallel",), vmem_limit_bytes=_VMEM_LIMIT),
    )(q_fea, k_fea, side, negk,
      wp1, params['bp1'], wp2, params['bp2'],
      wq, params['bq'], wkv, bkv, wo, params['bo'])
    return out[:wn]


# --------------------------------------------------------------------------
# Host-side sparse-index glue (numpy), mirroring mssvt_ops / pointnet2_utils
# --------------------------------------------------------------------------

def get_vox_query_table_np(win1, win2):
    gx, gy, gz = np.meshgrid(np.arange(win2[0]), np.arange(win2[1]),
                             np.arange(win2[2]), indexing='ij')
    xyz = np.stack([gx, gy, gz], -1).reshape(-1, 3)
    xyz = xyz - (np.array(win2) // 2)[None, :]
    order = np.argsort(np.max(np.abs(xyz), -1), kind='stable')
    xyz = xyz[order]
    offset = [1 - win1[i] % 2 for i in range(3)]
    m = np.ones(len(xyz), bool)
    for i in range(3):
        m &= (xyz[:, i] <= win1[i] // 2 + offset[i]) & (xyz[:, i] >= -(win1[i] // 2))
    xyz_w1, xyz_w2 = xyz[m], xyz[~m]
    mo = (xyz_w1[:, 0] % 2 == 1) & (xyz_w1[:, 1] % 2 == 1)
    me = (xyz_w1[:, 0] % 2 == 0) & (xyz_w1[:, 1] % 2 == 0)
    table = {'odd': xyz_w1[mo], 'even': xyz_w1[me],
             'win1': xyz_w1[~(mo | me)], 'win2': xyz_w2}
    return table, int(mo.sum()), int(me.sum())


def window_partition_np(indices, win1):
    # indices: [N, 4] (b, z, y, x)
    b = indices[:, 0]
    wz = indices[:, 1] // win1[2]
    wy = indices[:, 2] // win1[1]
    wx = indices[:, 3] // win1[0]
    wins = np.unique(np.stack([b, wz, wy, wx], 1), axis=0)
    return wins.astype(np.int64)


def gather_windows_np(indices, win_ind, win1, spatial_shape, query_sets):
    # TODO(synk): mssvt_ops.gather_two_window_voxels is a custom CUDA hash-map
    # kernel; its semantics are reproduced here with per-batch python dicts.
    tables, counts = {}, {}
    for (b, z, y, x) in indices:
        li = counts.get(int(b), 0)
        tables.setdefault(int(b), {})[(int(x), int(y), int(z))] = li
        counts[int(b)] = li + 1
    out_ind, out_coord = {}, {}
    for name, offsets in query_sets.items():
        wn, q = len(win_ind), len(offsets)
        ind = np.full((wn, q), -1, np.int64)
        coord = np.zeros((wn, q, 3), np.float32)
        for wi, (b, wz, wy, wx) in enumerate(win_ind):
            cx = int(wx) * win1[0] + win1[0] // 2
            cy = int(wy) * win1[1] + win1[1] // 2
            cz = int(wz) * win1[2] + win1[2] // 2
            for qi, (ox, oy, oz) in enumerate(offsets):
                vx_, vy_, vz_ = cx + int(ox), cy + int(oy), cz + int(oz)
                coord[wi, qi] = (vx_, vy_, vz_)
                if (0 <= vx_ < spatial_shape[0] and 0 <= vy_ < spatial_shape[1]
                        and 0 <= vz_ < spatial_shape[2]):
                    ind[wi, qi] = tables.get(int(b), {}).get((vx_, vy_, vz_), -1)
        out_ind[name], out_coord[name] = ind, coord
    return out_ind, out_coord


def fps_np(xyz, n_sample):
    # pointnet2_utils.farthest_point_sample (starts at index 0), host numpy
    wn, n, _ = xyz.shape
    idx = np.zeros((wn, n_sample), np.int64)
    for w in range(wn):
        dist = np.full(n, 1e10)
        far = 0
        for s in range(n_sample):
            idx[w, s] = far
            d = np.sum((xyz[w] - xyz[w, far]) ** 2, -1)
            dist = np.minimum(dist, d)
            far = int(np.argmax(dist))
    return idx


# --------------------------------------------------------------------------
# Block / model forward
# --------------------------------------------------------------------------

def mssvt_block_forward(features, indices_np, batch_size, params, cfg):
    C = cfg['in_channels']
    win1, win2 = cfg['window_size']
    grid_size = cfg['grid_size']
    voxel_size = np.array(cfg['voxel_size'], np.float32)
    pcr_min = np.array(cfg['point_cloud_range'][:3], np.float32)
    K = cfg['key_num_sample']
    num_heads = cfg['num_heads']

    feats_short_cut = features
    # LayerNorm emits bf16 directly (only consumed by MXU-bound gathers)
    feats_norm_bf = layernorm_pallas(features, params['ln1_g'], params['ln1_b'])

    table, _, _ = get_vox_query_table_np(win1, win2)
    q_table = {'odd': table['odd'], 'even': table['even'],
               'win1': np.concatenate([table['odd'], table['even'], table['win1']], 0),
               'win2': table['win2']}
    win_ind = window_partition_np(indices_np, win1)            # [W, 4] (b,wz,wy,wx)
    ind_d, coord_d = gather_windows_np(indices_np, win_ind, win1, grid_size, q_table)

    v_bs_cnt = np.array([(indices_np[:, 0] == b).sum() for b in range(batch_size)])
    v_offsets = np.concatenate([[0], np.cumsum(v_bs_cnt)[:-1]]).astype(np.int64)
    win_batch = win_ind[:, 0]
    n_vox = features.shape[0]
    Wn = win_ind.shape[0]

    # cbs_mode='odd_even' query selection
    qkey = {0: 'even', 1: 'odd'}.get(cfg['cbs_pattern'], 'win1')
    q_ind = ind_d[qkey]
    win1_ind = ind_d['win1']
    win2_ind = ind_d['win2']

    # farthest point sampling of keys from both window scales (host numpy)
    k_fps_ind_w1 = fps_np(coord_d['win1'], K)
    k_fps_ind_w2 = fps_np(coord_d['win2'], K)
    k_fps_mask_w1 = (k_fps_ind_w1 == 0); k_fps_mask_w1[:, 0] = False
    k_fps_mask_w2 = (k_fps_ind_w2 == 0); k_fps_mask_w2[:, 0] = False
    k_ind_w1 = np.take_along_axis(win1_ind, k_fps_ind_w1, axis=1)
    k_ind_w2 = np.take_along_axis(win2_ind, k_fps_ind_w2, axis=1)
    k_fps_mask_w1 |= (k_ind_w1 < 0)
    k_fps_mask_w2 |= (k_ind_w2 < 0)

    k_ind = np.concatenate([k_ind_w1, k_ind_w2], axis=1)
    k_mask = np.concatenate([k_fps_mask_w1, k_fps_mask_w2], axis=1)

    # pad sample axes to multiples of 16 for clean bf16 sublane tiling in-kernel
    SQP = _round_up(q_ind.shape[1], 16)
    SKP = _round_up(k_ind.shape[1], 16)
    q_ind_p = np.pad(q_ind, ((0, 0), (0, SQP - q_ind.shape[1])), constant_values=-1)
    k_ind_p = np.pad(k_ind, ((0, 0), (0, SKP - k_ind.shape[1])), constant_values=-1)
    k_mask_p = np.pad(k_mask, ((0, 0), (0, SKP - k_mask.shape[1])), constant_values=True)
    q_mask_p = q_ind_p < 0
    k_mask_p = k_mask_p | (k_ind_p < 0)

    def group(feat, ind):   # mssvt_ops.grouping_operation (XLA gather)
        # TODO(synk): an in-kernel gather (PrefetchScalarGridSpec + SMEM index
        # tables) would avoid materializing these [W,S,C] copies in HBM; kept
        # as a single XLA gather here.
        idx = np.maximum(ind, 0) + v_offsets[win_batch][:, None]
        return feat[jnp.asarray(idx)]                           # [W, S, C']

    q_fea = group(feats_norm_bf, q_ind_p)                       # [Wn, SQP, C] bf16
    k_fea = group(feats_norm_bf, k_ind_p)                       # [Wn, SKP, C] bf16

    voxel_coord = (jnp.asarray(indices_np[:, [3, 2, 1]], jnp.float32) + 0.5) \
        * jnp.asarray(voxel_size) + jnp.asarray(pcr_min)
    win_size = voxel_size * np.array(win1, np.float32)
    win_center = (jnp.asarray(win_ind[:, [3, 2, 1]], jnp.float32) + 0.5) \
        * jnp.asarray(win_size) + jnp.asarray(pcr_min)

    q_rel = (group(voxel_coord, q_ind_p) - win_center[:, None, :]) \
        * jnp.asarray(~q_mask_p, jnp.float32)[..., None]
    k_rel = (group(voxel_coord, k_ind_p) - win_center[:, None, :]) \
        * jnp.asarray(~k_mask_p, jnp.float32)[..., None]
    q_pos = jnp.concatenate(
        [q_rel, jnp.broadcast_to(win_center[:, None, :], q_rel.shape)], axis=-1)
    k_pos = jnp.concatenate(
        [k_rel, jnp.broadcast_to(win_center[:, None, :], k_rel.shape)], axis=-1)

    # pack the narrow side inputs: lanes 0-5 = pos, lane 6 = q-keep, lane 7 = pad
    q_keep = jnp.asarray(~q_mask_p, jnp.float32)[..., None]     # [Wn, SQP, 1]
    side = jnp.concatenate([
        jnp.concatenate([q_pos, q_keep, jnp.zeros_like(q_keep)], axis=-1),
        jnp.concatenate([k_pos, jnp.zeros((Wn, SKP, 2), jnp.float32)], axis=-1),
    ], axis=1)                                                   # [Wn, SQP+SKP, 8]
    negk = jnp.asarray(k_mask_p, jnp.float32)[:, None, :] * (-1e9)  # [Wn, 1, SKP]

    attn = mha_pos_attn_pallas(q_fea, k_fea, side, negk, params, num_heads,
                               win_block=cfg.get('win_block', 64))   # bf16

    # scatter-as-gather: host-built inverse index (torch index_put semantics;
    # window voxels are disjoint -> at most one source per voxel, last wins).
    # TODO(synk): use_feature_interpolation=True path (pointnet2 three_nn
    # inverse-distance interpolation) not implemented; using the False branch.
    glob = np.where(q_ind_p >= 0, q_ind_p + v_offsets[win_batch][:, None], -1)
    rows = np.arange(glob.size, dtype=np.int64).reshape(glob.shape)
    src_row = np.zeros(n_vox, np.int64)
    valid = np.zeros(n_vox, bool)
    gm = glob.reshape(-1) >= 0
    src_row[glob.reshape(-1)[gm]] = rows.reshape(-1)[gm]
    valid[glob.reshape(-1)[gm]] = True

    attn_sel = attn.reshape(-1, C)[jnp.asarray(src_row)]        # [N, C] bf16 gather
    valid_f = jnp.asarray(valid, jnp.float32)[:, None]

    # fused: select + residual + LN2 -> FFN -> residual (drop_path/dropout = id)
    new_features = ffn_pallas(attn_sel, feats_short_cut, valid_f, params)
    # out_channels == in_channels -> no out_linear (hasattr check in torch)
    return new_features


def mssvt_forward(batch_dict, params, cfg):
    feats = batch_dict['voxel_features']
    coords = np.asarray(batch_dict['voxel_coords'])
    new_feats = mssvt_block_forward(feats, coords, batch_dict['batch_size'],
                                    params, cfg)
    # TODO(synk): MixedScaleSparseTransformerCompressBlock not included in this
    # synthetic single-block backbone.
    batch_dict['encoded_spconv_tensor'] = {
        'features': new_feats, 'indices': coords,
        'spatial_shape': cfg['grid_size'], 'voxel_size': cfg['voxel_size'],
        'point_cloud_range': cfg['point_cloud_range'],
        'batch_size': batch_dict['batch_size']}
    batch_dict['encoded_spconv_tensor_stride'] = 1
    return batch_dict


# --------------------------------------------------------------------------
# Deterministic parameter init
# --------------------------------------------------------------------------

def init_params(key, C, F):
    def nrm(k, shape, s=0.1):
        return s * jax.random.normal(k, shape, jnp.float32)
    ks = iter(jax.random.split(key, 16))
    p = {
        'ln1_g': jnp.ones((1, C), jnp.float32), 'ln1_b': jnp.zeros((1, C), jnp.float32),
        'ln2_g': jnp.ones((1, C), jnp.float32), 'ln2_b': jnp.zeros((1, C), jnp.float32),
    }
    for name in ('wq', 'wk', 'wv', 'wo'):
        p[name] = nrm(next(ks), (C, C))
    for name in ('bq', 'bk', 'bv', 'bo'):
        p[name] = nrm(next(ks), (1, C), 0.01)
    p['w1'] = nrm(next(ks), (C, F)); p['b1'] = nrm(next(ks), (1, F), 0.01)
    p['w2'] = nrm(next(ks), (F, C)); p['b2'] = nrm(next(ks), (1, C), 0.01)
    p['wp1'] = nrm(next(ks), (6, C)); p['bp1'] = nrm(next(ks), (1, C), 0.01)
    p['wp2'] = nrm(next(ks), (C, C)); p['bp2'] = nrm(next(ks), (1, C), 0.01)
    return p


# --------------------------------------------------------------------------
# Main
# --------------------------------------------------------------------------

if __name__ == "__main__":
    cfg = dict(
        grid_size=[8, 8, 8],
        voxel_size=[0.1, 0.1, 0.1],
        point_cloud_range=[0.0, 0.0, 0.0, 0.8, 0.8, 0.8],
        in_channels=32, ff_channels=64, out_channels=32, num_heads=4,
        window_size=[[2, 2, 2], [4, 4, 4]],
        key_num_sample=8, cbs_mode='odd_even', cbs_pattern=1,
        use_feature_interpolation=False,
        win_block=64,
    )
    B = 2
    C, F = cfg['in_channels'], cfg['ff_channels']

    key = jax.random.PRNGKey(0)
    k_params, k_coords, k_feat = jax.random.split(key, 3)

    # deterministic synthetic sparse voxel tensor (sorted by batch)
    n_per_batch = 40
    gx, gy, gz = cfg['grid_size']
    coords_list = []
    for b in range(B):
        kb = jax.random.fold_in(k_coords, b)
        flat = np.asarray(jnp.sort(jax.random.permutation(kb, gx * gy * gz)[:n_per_batch]))
        z = flat // (gx * gy)
        y = (flat // gx) % gy
        x = flat % gx
        coords_list.append(np.stack([np.full_like(x, b), z, y, x], 1))
    voxel_coords = np.concatenate(coords_list, 0).astype(np.int64)   # [N,4] (b,z,y,x)
    n_vox = voxel_coords.shape[0]
    voxel_features = 0.5 * jax.random.normal(k_feat, (n_vox, C), jnp.float32)

    params = init_params(k_params, C, F)
    batch_dict = {'voxel_features': voxel_features,
                  'voxel_coords': voxel_coords,
                  'batch_size': B}

    out_dict = mssvt_forward(batch_dict, params, cfg)
    feats = out_dict['encoded_spconv_tensor']['features']
    jax.block_until_ready(feats)
    assert feats.shape == (n_vox, cfg['out_channels'])
    assert bool(jnp.all(jnp.isfinite(feats)))
    print("KERNEL_OK")
</pallas_src>

<mosaic_0001>
module attributes {stable_mosaic.version = 11 : i64} {
  func.func @_layernorm_kernel(%arg0: i32, %arg1: memref<80x32xf32, #tpu.memory_space<vmem>>, %arg2: memref<1x32xf32, #tpu.memory_space<vmem>>, %arg3: memref<1x32xf32, #tpu.memory_space<vmem>>, %arg4: memref<80x32xbf16, #tpu.memory_space<vmem>>) attributes {dimension_semantics = [#tpu.dimension_semantics<parallel>], iteration_bounds = array<i64: 1>, scalar_prefetch = 0 : i64, scratch_operands = 0 : i64, tpu.core_type = #tpu.core_type<tc>, window_params = [{transform_indices = @transform_0, window_bounds = array<i64: 80, 32>}, {pipeline_mode = #tpu.pipeline_mode<synchronous>, transform_indices = @transform_1, window_bounds = array<i64: 1, 32>}, {pipeline_mode = #tpu.pipeline_mode<synchronous>, transform_indices = @transform_2, window_bounds = array<i64: 1, 32>}, {transform_indices = @transform_3, window_bounds = array<i64: 80, 32>}]} {
    %c0 = arith.constant 0 : index
    %c0_0 = arith.constant 0 : index
    %0 = vector.load %arg1[%c0, %c0_0] : memref<80x32xf32, #tpu.memory_space<vmem>>, vector<80x32xf32>
    %cst = arith.constant dense<0.000000e+00> : vector<80xf32>
    %1 = vector.multi_reduction <add>, %0, %cst [1] : vector<80x32xf32> to vector<80xf32>
    %2 = vector.shape_cast %1 : vector<80xf32> to vector<80x1xf32>
    %cst_1 = arith.constant 3.200000e+01 : f32
    %3 = vector.broadcast %cst_1 : f32 to vector<80x1xf32>
    %4 = arith.divf %2, %3 : vector<80x1xf32>
    %5 = vector.broadcast %4 : vector<80x1xf32> to vector<80x32xf32>
    %6 = arith.subf %0, %5 : vector<80x32xf32>
    %7 = vector.broadcast %4 : vector<80x1xf32> to vector<80x32xf32>
    %8 = arith.subf %0, %7 : vector<80x32xf32>
    %9 = arith.mulf %6, %8 : vector<80x32xf32>
    %cst_2 = arith.constant dense<0.000000e+00> : vector<80xf32>
    %10 = vector.multi_reduction <add>, %9, %cst_2 [1] : vector<80x32xf32> to vector<80xf32>
    %11 = vector.shape_cast %10 : vector<80xf32> to vector<80x1xf32>
    %cst_3 = arith.constant 3.200000e+01 : f32
    %12 = vector.broadcast %cst_3 : f32 to vector<80x1xf32>
    %13 = arith.divf %11, %12 : vector<80x1xf32>
    %14 = vector.broadcast %4 : vector<80x1xf32> to vector<80x32xf32>
    %15 = arith.subf %0, %14 : vector<80x32xf32>
    %cst_4 = arith.constant 9.99999974E-6 : f32
    %16 = vector.broadcast %cst_4 : f32 to vector<80x1xf32>
    %17 = arith.addf %13, %16 : vector<80x1xf32>
    %18 = math.rsqrt %17 : vector<80x1xf32>
    %19 = vector.broadcast %18 : vector<80x1xf32> to vector<80x32xf32>
    %20 = arith.mulf %15, %19 : vector<80x32xf32>
    %c0_5 = arith.constant 0 : index
    %c0_6 = arith.constant 0 : index
    %21 = vector.load %arg2[%c0_5, %c0_6] : memref<1x32xf32, #tpu.memory_space<vmem>>, vector<1x32xf32>
    %22 = vector.broadcast %21 : vector<1x32xf32> to vector<80x32xf32>
    %23 = arith.mulf %20, %22 : vector<80x32xf32>
    %c0_7 = arith.constant 0 : index
    %c0_8 = arith.constant 0 : index
    %24 = vector.load %arg3[%c0_7, %c0_8] : memref<1x32xf32, #tpu.memory_space<vmem>>, vector<1x32xf32>
    %25 = vector.broadcast %24 : vector<1x32xf32> to vector<80x32xf32>
    %26 = arith.addf %23, %25 : vector<80x32xf32>
    %27 = arith.truncf %26 : vector<80x32xf32> to vector<80x32xbf16>
    %c0_9 = arith.constant 0 : index
    %c0_10 = arith.constant 0 : index
    %28 = vector.load %arg4[%c0_9, %c0_10] : memref<80x32xbf16, #tpu.memory_space<vmem>>, vector<80x32xbf16>
    tpu.vector_store %arg4[%c0_9, %c0_10], %27 {strides = array<i32>} : memref<80x32xbf16, #tpu.memory_space<vmem>>, vector<80x32xbf16>,
    return
  }
  func.func @transform_0(%arg0: i32) -> (i32, i32) {
    %c0_i32 = arith.constant 0 : i32
    %c0_i32_0 = arith.constant 0 : i32
    return %arg0, %c0_i32 : i32, i32
  }
  func.func @transform_1(%arg0: i32) -> (i32, i32) {
    %c0_i32 = arith.constant 0 : i32
    %c0_i32_0 = arith.constant 0 : i32
    %c0_i32_1 = arith.constant 0 : i32
    return %c0_i32, %c0_i32_0 : i32, i32
  }
  func.func @transform_2(%arg0: i32) -> (i32, i32) {
    %c0_i32 = arith.constant 0 : i32
    %c0_i32_0 = arith.constant 0 : i32
    %c0_i32_1 = arith.constant 0 : i32
    return %c0_i32, %c0_i32_0 : i32, i32
  }
  func.func @transform_3(%arg0: i32) -> (i32, i32) {
    %c0_i32 = arith.constant 0 : i32
    %c0_i32_0 = arith.constant 0 : i32
    return %arg0, %c0_i32 : i32, i32
  }
}

</mosaic_0001>

<llo_original>
// kernel: tpu_custom_call.1
$region0: #{tpu_custom_call.1}
  #allocation0 [shape = 'u32[]', space=smem, size = 0x4, offset = 0x4, fixed_abs, tag = 'smem constant byte address 0x4 - core index']
  #allocation1 [shape = 'u32[144,128]{1,0:T(1,128)}', space=vmem, size = 0x12000, scoped, tag = 'internal scratch']
  %s0 = inlined_call_operand.vmem [shape: f32[80,32], index: 0, kind: input, shape index: {}]
  %s1 = inlined_call_operand.vmem [shape: f32[1,32], index: 1, kind: input, shape index: {}]
  %s2 = inlined_call_operand.vmem [shape: f32[1,32], index: 2, kind: input, shape index: {}]
  %s3 = inlined_call_operand.vmem [shape: bf16[80,32], index: 3, kind: output, shape index: {}]
  %s4 = sld [smem:[#allocation0]]
  $region22: #{tpu_custom_call.1} parent=0
    _
  %s6 = ssub.s32 1, %s4
  %s7 = scalar_select 0, %s6, %s4
  // Predicated region
  $region2: #{tpu_custom_call.1} parent=0 // pred_check
    _
  $region3: #{tpu_custom_call.1} parent=0 // pred_check_branch
    %9 = sbr.rel (0) target = $region5
  $region4: #{tpu_custom_call.1} parent=0 // pred_region
    _
  $region5: #{tpu_custom_call.1} parent=0 // pred_fallthru
    _
  // Predicated region
  $region6: #{tpu_custom_call.1} parent=0 // pred_check
    _
  $region7: #{tpu_custom_call.1} parent=0 // pred_check_branch
    %11 = sbr.rel (0) target = $region9
  $region8: #{tpu_custom_call.1} parent=0 // pred_region
    _
  $region9: #{tpu_custom_call.1} parent=0 // pred_fallthru
    _
  // Predicated region
  $region10: #{tpu_custom_call.1} parent=0 // pred_check
    _
  $region11: #{tpu_custom_call.1} parent=0 // pred_check_branch
    %13 = sbr.rel (0) target = $region13
  $region12: #{tpu_custom_call.1} parent=0 // pred_region
    _
  $region13: #{tpu_custom_call.1} parent=0 // pred_fallthru
    _
  %v14 = vld [vmem:[%s0] sm:$0xff]
  %v15 = vld [vmem:[%s0 + $0x8] sm:$0xff]
  %v16 = vld [vmem:[%s0 + $0x10] sm:$0xff]
  %v17 = vld [vmem:[%s0 + $0x18] sm:$0xff]
  %v18 = vld [vmem:[%s0 + $0x20] sm:$0xff]
  %v19 = vld [vmem:[%s0 + $0x28] sm:$0xff]
  %v20 = vld [vmem:[%s0 + $0x30] sm:$0xff]
  %v21 = vld [vmem:[%s0 + $0x38] sm:$0xff]
  %v22 = vld [vmem:[%s0 + $0x40] sm:$0xff]
  %v23 = vld [vmem:[%s0 + $0x48] sm:$0xff]
  %vm24 = vcmask 261120
  %v25 = vsel %vm24, %v14, 0.0
  %26 = vadd.xlane.f32.xlu0 %v25
  %v27 = vpop.xlane.xlu0 %26
  %v28 = vsel %vm24, %v15, 0.0
  %29 = vadd.xlane.f32.xlu0 %v28
  %v30 = vpop.xlane.xlu0 %29
  %v31 = vsel %vm24, %v16, 0.0
  %32 = vadd.xlane.f32.xlu0 %v31
  %v33 = vpop.xlane.xlu0 %32
  %v34 = vsel %vm24, %v17, 0.0
  %35 = vadd.xlane.f32.xlu0 %v34
  %v36 = vpop.xlane.xlu0 %35
  %v37 = vsel %vm24, %v18, 0.0
  %38 = vadd.xlane.f32.xlu0 %v37
  %v39 = vpop.xlane.xlu0 %38
  %v40 = vsel %vm24, %v19, 0.0
  %41 = vadd.xlane.f32.xlu0 %v40
  %v42 = vpop.xlane.xlu0 %41
  %v43 = vsel %vm24, %v20, 0.0
  %44 = vadd.xlane.f32.xlu0 %v43
  %v45 = vpop.xlane.xlu0 %44
  %v46 = vsel %vm24, %v21, 0.0
  %47 = vadd.xlane.f32.xlu0 %v46
  %v48 = vpop.xlane.xlu0 %47
  %v49 = vsel %vm24, %v22, 0.0
  %50 = vadd.xlane.f32.xlu0 %v49
  %v51 = vpop.xlane.xlu0 %50
  %v52 = vsel %vm24, %v23, 0.0
  %53 = vadd.xlane.f32.xlu0 %v52
  %v54 = vpop.xlane.xlu0 %53
  %v55 = vrcp.pop 32.0
  %v56 = vmul.f32 %v27, %v55
  %v57 = vmul.f32 %v30, %v55
  %v58 = vmul.f32 %v33, %v55
  %v59 = vmul.f32 %v36, %v55
  %v60 = vmul.f32 %v39, %v55
  %v61 = vmul.f32 %v42, %v55
  %v62 = vmul.f32 %v45, %v55
  %v63 = vmul.f32 %v48, %v55
  %v64 = vmul.f32 %v51, %v55
  %v65 = vmul.f32 %v54, %v55
  %v66 = vsub.f32 %v14, %v56
  %v67 = vsub.f32 %v15, %v57
  %v68 = vsub.f32 %v16, %v58
  %v69 = vsub.f32 %v17, %v59
  %v70 = vsub.f32 %v18, %v60
  %v71 = vsub.f32 %v19, %v61
  %v72 = vsub.f32 %v20, %v62
  %v73 = vsub.f32 %v21, %v63
  %v74 = vsub.f32 %v22, %v64
  %v75 = vsub.f32 %v23, %v65
  %v76 = vmul.f32 %v66, %v66
  %v77 = vmul.f32 %v67, %v67
  %v78 = vmul.f32 %v68, %v68
  %v79 = vmul.f32 %v69, %v69
  %v80 = vmul.f32 %v70, %v70
  %v81 = vmul.f32 %v71, %v71
  %v82 = vmul.f32 %v72, %v72
  %v83 = vmul.f32 %v73, %v73
  %v84 = vmul.f32 %v74, %v74
  %v85 = vmul.f32 %v75, %v75
  %v86 = vsel %vm24, %v76, 0.0
  %87 = vadd.xlane.f32.xlu0 %v86
  %v88 = vpop.xlane.xlu0 %87
  %v89 = vsel %vm24, %v77, 0.0
  %90 = vadd.xlane.f32.xlu0 %v89
  %v91 = vpop.xlane.xlu0 %90
  %v92 = vsel %vm24, %v78, 0.0
  %93 = vadd.xlane.f32.xlu0 %v92
  %v94 = vpop.xlane.xlu0 %93
  %v95 = vsel %vm24, %v79, 0.0
  %96 = vadd.xlane.f32.xlu0 %v95
  %v97 = vpop.xlane.xlu0 %96
  %v98 = vsel %vm24, %v80, 0.0
  %99 = vadd.xlane.f32.xlu0 %v98
  %v100 = vpop.xlane.xlu0 %99
  %v101 = vsel %vm24, %v81, 0.0
  %102 = vadd.xlane.f32.xlu0 %v101
  %v103 = vpop.xlane.xlu0 %102
  %v104 = vsel %vm24, %v82, 0.0
  %105 = vadd.xlane.f32.xlu0 %v104
  %v106 = vpop.xlane.xlu0 %105
  %v107 = vsel %vm24, %v83, 0.0
  %108 = vadd.xlane.f32.xlu0 %v107
  %v109 = vpop.xlane.xlu0 %108
  %v110 = vsel %vm24, %v84, 0.0
  %111 = vadd.xlane.f32.xlu0 %v110
  %v112 = vpop.xlane.xlu0 %111
  %v113 = vsel %vm24, %v85, 0.0
  %114 = vadd.xlane.f32.xlu0 %v113
  %v115 = vpop.xlane.xlu0 %114
  %v116 = vmul.f32 %v88, %v55
  %v117 = vmul.f32 %v91, %v55
  %v118 = vmul.f32 %v94, %v55
  %v119 = vmul.f32 %v97, %v55
  %v120 = vmul.f32 %v100, %v55
  %v121 = vmul.f32 %v103, %v55
  %v122 = vmul.f32 %v106, %v55
  %v123 = vmul.f32 %v109, %v55
  %v124 = vmul.f32 %v112, %v55
  %v125 = vmul.f32 %v115, %v55
  %v126 = vadd.f32 %v116, 1e-05
  %v127 = vadd.f32 %v117, 1e-05
  %v128 = vadd.f32 %v118, 1e-05
  %v129 = vadd.f32 %v119, 1e-05
  %v130 = vadd.f32 %v120, 1e-05
  %v131 = vadd.f32 %v121, 1e-05
  %v132 = vadd.f32 %v122, 1e-05
  %v133 = vadd.f32 %v123, 1e-05
  %v134 = vadd.f32 %v124, 1e-05
  %v135 = vadd.f32 %v125, 1e-05
  %v136 = vrsqrt.pop %v126
  %v137 = vrsqrt.pop %v127
  %v138 = vrsqrt.pop %v128
  %v139 = vrsqrt.pop %v129
  %v140 = vrsqrt.pop %v130
  %v141 = vrsqrt.pop %v131
  %v142 = vrsqrt.pop %v132
  %v143 = vrsqrt.pop %v133
  %v144 = vrsqrt.pop %v134
  %v145 = vrsqrt.pop %v135
  %v146 = vmul.f32 %v66, %v136
  %v147 = vmul.f32 %v67, %v137
  %v148 = vmul.f32 %v68, %v138
  %v149 = vmul.f32 %v69, %v139
  %v150 = vmul.f32 %v70, %v140
  %v151 = vmul.f32 %v71, %v141
  %v152 = vmul.f32 %v72, %v142
  %v153 = vmul.f32 %v73, %v143
  %v154 = vmul.f32 %v74, %v144
  %v155 = vmul.f32 %v75, %v145
  %v156 = vld [vmem:[%s1] sm:$0x1]
  %v158 = vlaneseq
  %v159 = vshrl.u32 %v158, 7
  %v160 = vsub.s32 0, %v159
  %v161 = vrot.slane %v156, %v160
  %v163 = vmul.f32 %v146, %v161
  %v164 = vmul.f32 %v147, %v161
  %v165 = vmul.f32 %v148, %v161
  %v166 = vmul.f32 %v149, %v161
  %v167 = vmul.f32 %v150, %v161
  %v168 = vmul.f32 %v151, %v161
  %v169 = vmul.f32 %v152, %v161
  %v170 = vmul.f32 %v153, %v161
  %v171 = vmul.f32 %v154, %v161
  %v172 = vmul.f32 %v155, %v161
  %v173 = vld [vmem:[%s2] sm:$0x1]
  %v175 = vlaneseq
  %v176 = vshrl.u32 %v175, 7
  %v177 = vsub.s32 0, %v176
  %v178 = vrot.slane %v173, %v177
  %v180 = vadd.f32 %v163, %v178
  %v181 = vadd.f32 %v164, %v178
  %v182 = vadd.f32 %v165, %v178
  %v183 = vadd.f32 %v166, %v178
  %v184 = vadd.f32 %v167, %v178
  %v185 = vadd.f32 %v168, %v178
  %v186 = vadd.f32 %v169, %v178
  %v187 = vadd.f32 %v170, %v178
  %v188 = vadd.f32 %v171, %v178
  %v189 = vadd.f32 %v172, %v178
  %v190 = vpack.c.bf16 %v181, %v180
  %v191 = vpack.c.bf16 %v183, %v182
  %v192 = vpack.c.bf16 %v185, %v184
  %v193 = vpack.c.bf16 %v187, %v186
  %v194 = vpack.c.bf16 %v189, %v188
  %v200 = vunpack.c.l.b16 %v190
  %v201 = vunpack.c.h.b16 %v190
  %v202 = vunpack.c.l.b16 %v191
  %v203 = vunpack.c.h.b16 %v191
  %v204 = vunpack.c.l.b16 %v192
  %v205 = vunpack.c.h.b16 %v192
  %v206 = vunpack.c.l.b16 %v193
  %v207 = vunpack.c.h.b16 %v193
  %v208 = vunpack.c.l.b16 %v194
  %v209 = vunpack.c.h.b16 %v194
  %v210 = vpack.c.b16 %v200, %v200
  %v211 = vpack.c.b16 %v201, %v201
  %v212 = vpack.c.b16 %v202, %v202
  %v213 = vpack.c.b16 %v203, %v203
  %v214 = vpack.c.b16 %v204, %v204
  %v215 = vpack.c.b16 %v205, %v205
  %v216 = vpack.c.b16 %v206, %v206
  %v217 = vpack.c.b16 %v207, %v207
  %v218 = vpack.c.b16 %v208, %v208
  %v219 = vpack.c.b16 %v209, %v209
  %vm230 = vcmask 257024
  %231 = vst.msk [vmem:[%s3] sm:$0xf] %vm230, %v210
  %232 = vst.msk [vmem:[%s3 + $0x4] sm:$0xf] %vm230, %v211
  %233 = vst.msk [vmem:[%s3 + $0x8] sm:$0xf] %vm230, %v212
  %234 = vst.msk [vmem:[%s3 + $0xc] sm:$0xf] %vm230, %v213
  %235 = vst.msk [vmem:[%s3 + $0x10] sm:$0xf] %vm230, %v214
  %236 = vst.msk [vmem:[%s3 + $0x14] sm:$0xf] %vm230, %v215
  %237 = vst.msk [vmem:[%s3 + $0x18] sm:$0xf] %vm230, %v216
  %238 = vst.msk [vmem:[%s3 + $0x1c] sm:$0xf] %vm230, %v217
  %239 = vst.msk [vmem:[%s3 + $0x20] sm:$0xf] %vm230, %v218
  %240 = vst.msk [vmem:[%s3 + $0x24] sm:$0xf] %vm230, %v219
  // Predicated region
  $region14: #{tpu_custom_call.1} parent=0 // pred_check
    _
  $region15: #{tpu_custom_call.1} parent=0 // pred_check_branch
    %242 = sbr.rel (0) target = $region17
  $region16: #{tpu_custom_call.1} parent=0 // pred_region
    _
  $region17: #{tpu_custom_call.1} parent=0 // pred_fallthru
    _
  // Predicated region
  $region18: #{tpu_custom_call.1} parent=0 // pred_check
    _
  $region19: #{tpu_custom_call.1} parent=0 // pred_check_branch
    %244 = sbr.rel (0) target = $region21
  $region20: #{tpu_custom_call.1} parent=0 // pred_region
    _
  $region21: #{tpu_custom_call.1} parent=0 // pred_fallthru
    _

</llo_original>
